<compile_context>
chip_gen: v7x
topology: tpu7x:2x2x1
jax: 0.10.0
libtpu: 0.0.40
codegen_flags: <defaults>
</compile_context>

<pallas_src>
import math

import jax
import jax.numpy as jnp
from jax.experimental import pallas as pl
from jax.experimental.pallas import tpu as pltpu


def head_attention_kernel(ht_ref, att_ref, ct_ref, score_ref):
    """Per-batch-tile kernel: logits (MXU) -> exact softmax over T -> ct (VPU/XLU)."""
    ht = ht_ref[...]                              # (bt, T, E), input dtype (bf16 ok)
    att = att_ref[...].astype(ht.dtype)           # (E, 1)

    # Attention logits: contract E on the MXU, accumulate in f32.
    # (Low MXU utilization with E=32 / N=1, but off the critical path while the
    #  kernel is HBM-bound; see head-fusion TODO above.)
    logits = jax.lax.dot_general(
        ht, att,
        dimension_numbers=(((2,), (0,)), ((), ())),
        preferred_element_type=jnp.float32,
    )[..., 0]                                      # (bt, T) f32, T lane-dense

    # Exact softmax over the sequence axis (T on lanes -> fast XLU reductions).
    m = jnp.max(logits, axis=-1, keepdims=True)
    e = jnp.exp(logits - m)
    probs = e / jnp.sum(e, axis=-1, keepdims=True)   # (bt, T) f32, exact divide

    # Lane-dense attention-score store (last dim = T, not 1).
    score_ref[...] = probs.astype(score_ref.dtype)

    # ct[b, e] = sum_t probs[b, t] * ht[b, t, e]
    # VPU multiply with f32 probs broadcast over E + sublane (T) reduce in f32.
    # No singleton-M batched MXU matmul, no per-row MRF pop.
    w = probs[:, :, None]                             # (bt, T, 1) f32
    ct = jnp.sum(ht.astype(jnp.float32) * w, axis=1)  # (bt, E) f32
    ct_ref[...] = ct.astype(ct_ref.dtype)


def _round_up(x: int, m: int) -> int:
    return ((x + m - 1) // m) * m


def _sublanes_for_itemsize(itemsize: int) -> int:
    # Sub-32-bit dtypes pack along sublanes: f32 -> 8, bf16 -> 16, int8/fp8 -> 32.
    return {4: 8, 2: 16, 1: 32}.get(itemsize, 8)


def _vmem_budget_bytes() -> int:
    """Generation-dependent VMEM budget: half of physical per-core VMEM.
    ~64 MiB on v5e/v6e (128 MiB physical), ~32 MiB on v7x (64 MiB physical)."""
    phys = 64 << 20  # conservative fallback = v7x per-TC physical
    try:
        info = pltpu.get_tpu_info()
        phys = int(getattr(info, "vmem_capacity_bytes", phys))
    except Exception:
        pass
    return int(max(min(phys // 2, 64 << 20), 16 << 20))


def _tile_footprint_bytes(bt, T, E, in_itemsize, out_itemsize):
    """Padded VMEM bytes used per grid step (double-buffered blocks + in-kernel
    f32 temporaries + slack).  Accounts for 128-lane padding of the E=32 minor
    dim and dtype-dependent sublane padding of T."""
    Ep = _round_up(E, 128)
    Tp_in = _round_up(T, _sublanes_for_itemsize(in_itemsize))
    Tp_f32 = _round_up(T, 8)
    Tp_lane = _round_up(T, 128)
    in_block = bt * Tp_in * Ep * in_itemsize           # ht block
    f32_tmp = bt * Tp_f32 * Ep * 4                     # weighted product / upcast
    out_blocks = bt * (Ep + Tp_lane) * out_itemsize    # ct + score blocks
    return 2 * in_block + 2 * f32_tmp + 2 * out_blocks + (2 << 20)


def _pick_batch_tile(B, T, E, in_itemsize, out_itemsize, budget, min_grid=4):
    """Largest batch tile that (a) divides B, (b) is a multiple of 8 or the full
    batch (sublane rule on the (bt, E)/(bt, T) output blocks), (c) fits the
    padded, double-buffered footprint in the VMEM budget, and (d) leaves at
    least `min_grid` grid steps when the batch allows it (pipelining + v7x
    2-TensorCore sharding of the "parallel" axis)."""
    valid = [d for d in range(1, B + 1) if B % d == 0 and (d % 8 == 0 or d == B)]
    fitting = [d for d in valid
               if _tile_footprint_bytes(d, T, E, in_itemsize, out_itemsize) <= budget]
    if not fitting:
        return min(valid)
    for depth in (min_grid, 2, 1):
        cand = [d for d in fitting if B // d >= depth]
        if cand:
            return max(cand)
    return max(fitting)


def head_attention(ht: jax.Array, att: jax.Array, *, batch_tile: int | None = None):
    """Batch-tiled pipelined forward. Returns (ct (B,E), attention_score (B,T,1))."""
    B, T, E = ht.shape
    assert att.shape == (E, 1)

    in_itemsize = jnp.dtype(ht.dtype).itemsize
    out_dtype = ht.dtype
    out_itemsize = jnp.dtype(out_dtype).itemsize

    budget = _vmem_budget_bytes()
    bt = batch_tile if batch_tile is not None else _pick_batch_tile(
        B, T, E, in_itemsize, out_itemsize, budget)
    assert B % bt == 0 and (bt % 8 == 0 or bt == B), (
        "batch tile must divide B and be a multiple of 8 (or the full batch) "
        "to satisfy the sublane rule on the (bt, E)/(bt, T) output blocks")
    n_b = B // bt

    out_shape = (
        jax.ShapeDtypeStruct((B, E), out_dtype),   # ct
        jax.ShapeDtypeStruct((B, T), out_dtype),   # score (lane-dense)
    )

    cost = pl.CostEstimate(
        flops=4 * B * T * E + 5 * B * T,
        transcendentals=B * T,
        bytes_accessed=(B * T * E + E) * in_itemsize
        + (B * E + B * T) * out_itemsize,
    )

    ct, score = pl.pallas_call(
        head_attention_kernel,
        out_shape=out_shape,
        grid_spec=pltpu.PrefetchScalarGridSpec(
            num_scalar_prefetch=0,
            grid=(n_b,),
            in_specs=[
                pl.BlockSpec((bt, T, E), lambda i: (i, 0, 0)),
                pl.BlockSpec((E, 1), lambda i: (0, 0)),
            ],
            out_specs=[
                pl.BlockSpec((bt, E), lambda i: (i, 0)),
                pl.BlockSpec((bt, T), lambda i: (i, 0)),
            ],
        ),
        compiler_params=pltpu.CompilerParams(
            dimension_semantics=("parallel",),
            vmem_limit_bytes=budget,
        ),
        cost_estimate=cost,
    )(ht, att)

    # Restore the module's (B, T, 1) attention_score view outside the kernel.
    return ct, score.reshape(B, T, 1)


def head_attention_ref(ht, att):
    """Pure-JAX reference for sanity checking."""
    logits = jnp.einsum("bte,eo->bt", ht, att)
    probs = jax.nn.softmax(logits, axis=-1)
    a = probs[..., None]
    ct = jnp.sum(ht * a, axis=1)
    return ct, a


if __name__ == "__main__":
    # Module config: feat_in=128, heads_number=4 -> embedding_size E = 32.
    B, T, E = 2, 8, 32

    key = jax.random.PRNGKey(0)
    k_ht, k_att = jax.random.split(key)

    ht = jax.random.normal(k_ht, (B, T, E), dtype=jnp.float32)
    xavier_std = math.sqrt(2.0 / (E + 1))  # xavier_normal_ for (E, 1)
    att = xavier_std * jax.random.normal(k_att, (E, 1), dtype=jnp.float32)

    ct, attention_score = head_attention(ht, att)
    jax.block_until_ready((ct, attention_score))

    ct_ref, a_ref = head_attention_ref(ht, att)
    assert ct.shape == (B, E)
    assert attention_score.shape == (B, T, 1)
    # Exact softmax divide + f32 probs in the weighted sum -> tight tolerance.
    assert jnp.allclose(ct, ct_ref, atol=1e-4, rtol=1e-4)
    assert jnp.allclose(attention_score, a_ref, atol=1e-4, rtol=1e-4)

    # Multi-tile path: exercises DMA/compute pipelining, the min-grid-depth
    # selection (n_b >= 4 here), and padding-aware tile sizing.
    B2, T2 = 32, 64
    k1, k2 = jax.random.split(jax.random.PRNGKey(1))
    ht2 = jax.random.normal(k1, (B2, T2, E), dtype=jnp.float32)
    att2 = xavier_std * jax.random.normal(k2, (E, 1), dtype=jnp.float32)
    ct2, score2 = head_attention(ht2, att2)
    jax.block_until_ready((ct2, score2))
    ct2_ref, a2_ref = head_attention_ref(ht2, att2)
    assert jnp.allclose(ct2, ct2_ref, atol=1e-4, rtol=1e-4)
    assert jnp.allclose(score2, a2_ref, atol=1e-4, rtol=1e-4)

    print("KERNEL_OK")
</pallas_src>

<mosaic_0001>
module attributes {stable_mosaic.version = 11 : i64} {
  func.func @head_attention_kernel(%arg0: i32, %arg1: memref<2x8x32xf32, #tpu.memory_space<vmem>>, %arg2: memref<32x1xf32, #tpu.memory_space<vmem>>, %arg3: memref<2x32xf32, #tpu.memory_space<vmem>>, %arg4: memref<2x8xf32, #tpu.memory_space<vmem>>) attributes {dimension_semantics = [#tpu.dimension_semantics<parallel>], iteration_bounds = array<i64: 1>, scalar_prefetch = 0 : i64, scratch_operands = 0 : i64, tpu.core_type = #tpu.core_type<tc>, window_params = [{transform_indices = @transform_0, window_bounds = array<i64: 2, 8, 32>}, {pipeline_mode = #tpu.pipeline_mode<synchronous>, transform_indices = @transform_1, window_bounds = array<i64: 32, 1>}, {transform_indices = @transform_2, window_bounds = array<i64: 2, 32>}, {transform_indices = @transform_3, window_bounds = array<i64: 2, 8>}]} {
    %c0 = arith.constant 0 : index
    %c0_0 = arith.constant 0 : index
    %c0_1 = arith.constant 0 : index
    %0 = vector.load %arg1[%c0, %c0_0, %c0_1] : memref<2x8x32xf32, #tpu.memory_space<vmem>>, vector<2x8x32xf32>
    %c0_2 = arith.constant 0 : index
    %c0_3 = arith.constant 0 : index
    %1 = vector.load %arg2[%c0_2, %c0_3] : memref<32x1xf32, #tpu.memory_space<vmem>>, vector<32x1xf32>
    %cst = arith.constant dense<0.000000e+00> : vector<2x8x1xf32>
    %2 = tpu.matmul %0, %1, %cst {dimension_numbers = #tpu.dot_dimension_numbers<[2], [0], [0, 1], [1], [0, 0, 0, 1, 1, 1], [], []>} : vector<2x8x32xf32>, vector<32x1xf32>, vector<2x8x1xf32> -> vector<2x8x1xf32>
    %3 = vector.shape_cast %2 : vector<2x8x1xf32> to vector<2x8xf32>
    %cst_4 = arith.constant dense<0xFF800000> : vector<2xf32>
    %4 = vector.multi_reduction <maximumf>, %3, %cst_4 [1] : vector<2x8xf32> to vector<2xf32>
    %5 = vector.shape_cast %4 : vector<2xf32> to vector<2x1xf32>
    %6 = vector.broadcast %5 : vector<2x1xf32> to vector<2x8xf32>
    %7 = arith.subf %3, %6 : vector<2x8xf32>
    %8 = math.exp %7 : vector<2x8xf32>
    %cst_5 = arith.constant dense<0.000000e+00> : vector<2xf32>
    %9 = vector.multi_reduction <add>, %8, %cst_5 [1] : vector<2x8xf32> to vector<2xf32>
    %10 = vector.shape_cast %9 : vector<2xf32> to vector<2x1xf32>
    %11 = vector.broadcast %10 : vector<2x1xf32> to vector<2x8xf32>
    %12 = arith.divf %8, %11 : vector<2x8xf32>
    %c0_6 = arith.constant 0 : index
    %c0_7 = arith.constant 0 : index
    %13 = vector.load %arg4[%c0_6, %c0_7] : memref<2x8xf32, #tpu.memory_space<vmem>>, vector<2x8xf32>
    tpu.vector_store %arg4[%c0_6, %c0_7], %12 {strides = array<i32>} : memref<2x8xf32, #tpu.memory_space<vmem>>, vector<2x8xf32>,
    %14 = vector.shape_cast %12 : vector<2x8xf32> to vector<2x8x1xf32>
    %15 = vector.broadcast %14 : vector<2x8x1xf32> to vector<2x8x32xf32>
    %16 = arith.mulf %0, %15 : vector<2x8x32xf32>
    %cst_8 = arith.constant dense<0.000000e+00> : vector<2x32xf32>
    %17 = vector.multi_reduction <add>, %16, %cst_8 [1] : vector<2x8x32xf32> to vector<2x32xf32>
    %c0_9 = arith.constant 0 : index
    %c0_10 = arith.constant 0 : index
    %18 = vector.load %arg3[%c0_9, %c0_10] : memref<2x32xf32, #tpu.memory_space<vmem>>, vector<2x32xf32>
    tpu.vector_store %arg3[%c0_9, %c0_10], %17 {strides = array<i32>} : memref<2x32xf32, #tpu.memory_space<vmem>>, vector<2x32xf32>,
    return
  }
  func.func @transform_0(%arg0: i32) -> (i32, i32, i32) {
    %c0_i32 = arith.constant 0 : i32
    %c0_i32_0 = arith.constant 0 : i32
    %c0_i32_1 = arith.constant 0 : i32
    return %arg0, %c0_i32, %c0_i32_0 : i32, i32, i32
  }
  func.func @transform_1(%arg0: i32) -> (i32, i32) {
    %c0_i32 = arith.constant 0 : i32
    %c0_i32_0 = arith.constant 0 : i32
    %c0_i32_1 = arith.constant 0 : i32
    return %c0_i32, %c0_i32_0 : i32, i32
  }
  func.func @transform_2(%arg0: i32) -> (i32, i32) {
    %c0_i32 = arith.constant 0 : i32
    %c0_i32_0 = arith.constant 0 : i32
    return %arg0, %c0_i32 : i32, i32
  }
  func.func @transform_3(%arg0: i32) -> (i32, i32) {
    %c0_i32 = arith.constant 0 : i32
    %c0_i32_0 = arith.constant 0 : i32
    return %arg0, %c0_i32 : i32, i32
  }
}

</mosaic_0001>

<llo_original>
// kernel: tpu_custom_call.1
$region0: #{tpu_custom_call.1}
  #allocation0 [shape = 'u32[]', space=smem, size = 0x4, offset = 0x4, fixed_abs, tag = 'smem constant byte address 0x4 - core index']
  #allocation1 [shape = 'u32[144,128]{1,0:T(1,128)}', space=vmem, size = 0x12000, scoped, tag = 'internal scratch']
  %s0 = inlined_call_operand.vmem [shape: f32[2,8,32], index: 0, kind: input, shape index: {}]
  %s1 = inlined_call_operand.vmem [shape: f32[32,1], index: 1, kind: input, shape index: {}]
  %s2 = inlined_call_operand.hbm [shape: f32[2,32], index: 2, kind: output, shape index: {0}]
  %s3 = inlined_call_operand.hbm [shape: f32[2,8], index: 3, kind: output, shape index: {1}]
  %4 = xla_tuple %s2, %s3
  %s5 = sld [smem:[#allocation0]]
  $region26: #{tpu_custom_call.1} parent=0
    _
  %s7 = ssub.s32 1, %s5
  %s8 = scalar_select 0, %s7, %s5
  $region1: #{tpu_custom_call.1} parent=0
    #allocation2 [shape = 'u8[1024]{0}', space=vmem, size = 0x400, scoped, tag = 'output window, operand 0, single buffered']
    #allocation3 [shape = 's32[1]{0}', space=sflag, size = 0x4, scoped, tag = 'scoped memory for tpu_custom_call.1']
    #allocation4 [shape = 'u8[1024]{0}', space=vmem, size = 0x400, scoped, tag = 'output window, operand 1, single buffered']
    #allocation5 [shape = 's32[1]{0}', space=sflag, size = 0x4, scoped, tag = 'scoped memory for tpu_custom_call.1']
    %9 = vsyncpa [#allocation3], 0
    %10 = vsyncpa [#allocation5], 0
    // Predicated region
    $region2: #{tpu_custom_call.1} parent=1 // pred_check
      _
    $region3: #{tpu_custom_call.1} parent=1 // pred_check_branch
      %12 = sbr.rel (0) target = $region5
    $region4: #{tpu_custom_call.1} parent=1 // pred_region
      _
    $region5: #{tpu_custom_call.1} parent=1 // pred_fallthru
      _
    // Predicated region
    $region6: #{tpu_custom_call.1} parent=1 // pred_check
      _
    $region7: #{tpu_custom_call.1} parent=1 // pred_check_branch
      %14 = sbr.rel (0) target = $region9
    $region8: #{tpu_custom_call.1} parent=1 // pred_region
      _
    $region9: #{tpu_custom_call.1} parent=1 // pred_fallthru
      _
    %v15 = vld [vmem:[%s0] sm:$0xff]
    %v16 = vld [vmem:[%s0 + $0x8] sm:$0xff]
    %v17 = vld [vmem:[%s1] sm:$0xff]
    %v18 = vld [vmem:[%s1 + $0x8] sm:$0xff]
    %v19 = vld [vmem:[%s1 + $0x10] sm:$0xff]
    %v20 = vld [vmem:[%s1 + $0x18] sm:$0xff]
    %vm21 = vcmask 261120
    %v23 = vsel %vm21, %v15, 0
    %v26 = vsel %vm21, %v16, 0
    %28 = vmatprep.subr.mxu0 0.0
    %29 = vmatpush1.msra.mxu0 %v17
    %30 = vmatprep.subr.mxu0 0.0
    %31 = vmatpush1.msra.mxu0 %v18
    %32 = vmatprep.subr.mxu0 0.0
    %33 = vmatpush1.msra.mxu0 %v19
    %34 = vmatprep.subr.mxu0 0.0
    %35 = vmatpush1.msra.mxu0 %v20
    %36 = vmatprep.subr.mxu0 0.0
    %37 = vmatpush1.msra.mxu0 0.0
    %38 = vmatprep.subr.mxu0 0.0
    %39 = vmatpush1.msra.mxu0 0.0
    %40 = vmatprep.subr.mxu0 0.0
    %41 = vmatpush1.msra.mxu0 0.0
    %42 = vmatprep.subr.mxu0 0.0
    %43 = vmatpush1.msra.mxu0 0.0
    %44 = vmatprep.subr.mxu0 0.0
    %45 = vmatpush1.msra.mxu0 0.0
    %46 = vmatprep.subr.mxu0 0.0
    %47 = vmatpush1.msra.mxu0 0.0
    %48 = vmatprep.subr.mxu0 0.0
    %49 = vmatpush1.msra.mxu0 0.0
    %50 = vmatprep.subr.mxu0 0.0
    %51 = vmatpush1.msra.mxu0 0.0
    %52 = vmatprep.subr.mxu0 0.0
    %53 = vmatpush1.msra.mxu0 0.0
    %54 = vmatprep.subr.mxu0 0.0
    %55 = vmatpush1.msra.mxu0 0.0
    %56 = vmatprep.subr.mxu0 0.0
    %57 = vmatpush1.msra.mxu0 0.0
    %58 = vmatprep.subr.mxu0 0.0
    %59 = vmatpush1.msra.mxu0 0.0
    %60 = vmatprep.subr.mxu0 0.0
    %61 = vmatpush1.msra.mxu0 0.0
    %62 = vmatprep.subr.mxu0 0.0
    %63 = vmatpush1.msra.mxu0 0.0
    %64 = vmatprep.subr.mxu0 0.0
    %65 = vmatpush1.msra.mxu0 0.0
    %66 = vmatprep.subr.mxu0 0.0
    %67 = vmatpush1.msra.mxu0 0.0
    %68 = vmatprep.subr.mxu0 0.0
    %69 = vmatpush1.msra.mxu0 0.0
    %70 = vmatprep.subr.mxu0 0.0
    %71 = vmatpush1.msra.mxu0 0.0
    %72 = vmatprep.subr.mxu0 0.0
    %73 = vmatpush1.msra.mxu0 0.0
    %74 = vmatprep.subr.mxu0 0.0
    %75 = vmatpush1.msra.mxu0 0.0
    %76 = vmatprep.subr.mxu0 0.0
    %77 = vmatpush1.msra.mxu0 0.0
    %78 = vmatprep.subr.mxu0 0.0
    %79 = vmatpush1.msra.mxu0 0.0
    %80 = vmatprep.subr.mxu0 0.0
    %81 = vmatpush1.msra.mxu0 0.0
    %82 = vmatprep.subr.mxu0 0.0
    %83 = vmatpush1.msra.mxu0 0.0
    %84 = vmatprep.subr.mxu0 0.0
    %85 = vmatpush1.msra.mxu0 0.0
    %86 = vmatprep.subr.mxu0 0.0
    %87 = vmatpush1.msra.mxu0 0.0
    %88 = vmatprep.subr.mxu0 0.0
    %89 = vmatpush1.msra.mxu0 0.0
    %90 = vmatprep.subr.mxu0 0.0
    %91 = vmatpush1.msra.mxu0 0.0
    %92 = vmatprep.mubr.f32.mxu0 0.0
    %93 = vmatmul.mubr.f32.gmra.mrb[0].mxu0 %v23
    %v94 = vpop.f32.mrb[0].mxu0
    %v95 = vadd.f32 0.0, %v94
    %v96 = vpop.f32.mrb[0].mxu0
    %97 = vmatprep.mubr.f32.mxu0 0.0
    %98 = vmatmul.mubr.f32.gmra.mrb[0].mxu0 %v26
    %v99 = vpop.f32.mrb[0].mxu0
    %v100 = vadd.f32 0.0, %v99
    %v101 = vpop.f32.mrb[0].mxu0
    %102 = vdwg.mxu0
    %105 = vset.pattern.permute.xlu0 0
    %106 = vperm.xlu0 %105, %v95
    %v107 = vpop.permute.xlu0 %106
    %108 = vset.pattern.permute.xlu0 0
    %109 = vperm.xlu0 %108, %v100
    %v110 = vpop.permute.xlu0 %109
    %v111 = vlaneseq
    %v112 = vand.u32 %v111, 127
    %v113 = vlaneseq
    %v114 = vshrl.u32 %v113, 7
    %v115 = vsub.s32 %v112, %v114
    %v116 = vrot.slane %v107, %v115
    %v117 = vlaneseq
    %v118 = vshrl.u32 %v117, 7
    %v119 = vsub.s32 %v112, %v118
    %v120 = vrot.slane %v110, %v119
    %vm121 = vcmask 1041409
    %v122 = vsel %vm121, %v120, %v116
    %vm124 = vcmask 58368
    %v125 = vsel %vm124, %v122, -inf
    %126 = vmax.xlane.f32.xlu0 %v125
    %v127 = vpop.xlane.xlu0 %126
    %v129 = vlaneseq
    %v130 = vshrl.u32 %v129, 7
    %v131 = vsub.s32 0, %v130
    %v132 = vrot.slane %v127, %v131
    %v133 = vlaneseq
    %v134 = vshrl.u32 %v133, 7
    %v135 = vsub.s32 1, %v134
    %v136 = vrot.slane %v127, %v135
    %v139 = vsub.f32 %v95, %v132
    %v140 = vsub.f32 %v100, %v136
    %v141 = vmul.f32 %v139, 1.442695
    %v142 = vpow.pop %v141
    %v143 = vmul.f32 %v140, 1.442695
    %v144 = vpow.pop %v143
    %147 = vset.pattern.permute.xlu0 0
    %148 = vperm.xlu0 %147, %v142
    %v149 = vpop.permute.xlu0 %148
    %150 = vset.pattern.permute.xlu0 0
    %151 = vperm.xlu0 %150, %v144
    %v152 = vpop.permute.xlu0 %151
    %v153 = vlaneseq
    %v154 = vshrl.u32 %v153, 7
    %v155 = vsub.s32 %v112, %v154
    %v156 = vrot.slane %v149, %v155
    %v157 = vlaneseq
    %v158 = vshrl.u32 %v157, 7
    %v159 = vsub.s32 %v112, %v158
    %v160 = vrot.slane %v152, %v159
    %v161 = vsel %vm121, %v160, %v156
    %v163 = vsel %vm124, %v161, 0.0
    %164 = vadd.xlane.f32.xlu0 %v163
    %v165 = vpop.xlane.xlu0 %164
    %v167 = vlaneseq
    %v168 = vshrl.u32 %v167, 7
    %v169 = vsub.s32 0, %v168
    %v170 = vrot.slane %v165, %v169
    %v171 = vlaneseq
    %v172 = vshrl.u32 %v171, 7
    %v173 = vsub.s32 1, %v172
    %v174 = vrot.slane %v165, %v173
    %v177 = vrcp.pop %v170
    %v178 = vmul.f32 %v142, %v177
    %v179 = vrcp.pop %v174
    %v180 = vmul.f32 %v144, %v179
    %183 = vset.pattern.permute.xlu0 0
    %184 = vperm.xlu0 %183, %v178
    %v185 = vpop.permute.xlu0 %184
    %186 = vset.pattern.permute.xlu0 0
    %187 = vperm.xlu0 %186, %v180
    %v188 = vpop.permute.xlu0 %187
    %v189 = vlaneseq
    %v190 = vshrl.u32 %v189, 7
    %v191 = vsub.s32 %v112, %v190
    %v192 = vrot.slane %v185, %v191
    %v193 = vlaneseq
    %v194 = vshrl.u32 %v193, 7
    %v195 = vsub.s32 %v112, %v194
    %v196 = vrot.slane %v188, %v195
    %v197 = vsel %vm121, %v196, %v192
    %199 = vst.msk [vmem:[#allocation4] sm:$0x3] %vm124, %v197
    %v202 = vmul.f32 %v15, %v185
    %v203 = vmul.f32 %v16, %v188
    %v204 = vsel %vm21, %v202, 0.0
    %v205 = vrot.slane %v204, 4
    %v206 = vadd.f32 %v204, %v205
    %v207 = vrot.slane %v206, 2
    %v208 = vadd.f32 %v206, %v207
    %v209 = vrot.slane %v208, 1
    %v210 = vadd.f32 %v208, %v209
    %v211 = vsel %vm21, %v203, 0.0
    %v212 = vrot.slane %v211, 4
    %v213 = vadd.f32 %v211, %v212
    %v214 = vrot.slane %v213, 2
    %v215 = vadd.f32 %v213, %v214
    %v216 = vrot.slane %v215, 1
    %v217 = vadd.f32 %v215, %v216
    %v220 = vsel %vm121, %v217, %v210
    %vm222 = vcmask 254976
    %223 = vst.msk [vmem:[#allocation2] sm:$0x3] %vm222, %v220
    // Predicated region
    $region10: #{tpu_custom_call.1} parent=1 // pred_check
      _
    $region11: #{tpu_custom_call.1} parent=1 // pred_check_branch
      %225 = sbr.rel (0) target = $region13
    $region12: #{tpu_custom_call.1} parent=1 // pred_region
      %s227 = ssub.s32 32, 32
      %228 = vsyncadd [#allocation3], %s227
      %s230 = sshll.u32 [#allocation2], 4
      %s231 = int_to_ptr.vmem [resolvable:$true] %s230
      %233 = dma.vmem_to_hbm [thread:$0]  %s231, 32, %s2, [#allocation3]
    $region13: #{tpu_custom_call.1} parent=1 // pred_fallthru
      _
    // Predicated region
    $region14: #{tpu_custom_call.1} parent=1 // pred_check
      _
    $region15: #{tpu_custom_call.1} parent=1 // pred_check_branch
      %235 = sbr.rel (0) target = $region17
    $region16: #{tpu_custom_call.1} parent=1 // pred_region
      %s237 = ssub.s32 32, 32
      %238 = vsyncadd [#allocation5], %s237
      %s240 = sshll.u32 [#allocation4], 4
      %s241 = int_to_ptr.vmem [resolvable:$true] %s240
      %243 = dma.vmem_to_hbm [thread:$0]  %s241, 32, %s3, [#allocation5]
    $region17: #{tpu_custom_call.1} parent=1 // pred_fallthru
      _
    // Predicated region
    $region18: #{tpu_custom_call.1} parent=1 // pred_check
      _
    $region19: #{tpu_custom_call.1} parent=1 // pred_check_branch
      %245 = sbr.rel (0) target = $region21
    $region20: #{tpu_custom_call.1} parent=1 // pred_region
      %246 = dma.done [#allocation3], 32
    $region21: #{tpu_custom_call.1} parent=1 // pred_fallthru
      _
    // Predicated region
    $region22: #{tpu_custom_call.1} parent=1 // pred_check
      _
    $region23: #{tpu_custom_call.1} parent=1 // pred_check_branch
      %248 = sbr.rel (0) target = $region25
    $region24: #{tpu_custom_call.1} parent=1 // pred_region
      %249 = dma.done [#allocation5], 32
    $region25: #{tpu_custom_call.1} parent=1 // pred_fallthru
      _
    %250 = vsyncpa [#allocation3], 1
    %251 = vsyncpa [#allocation5], 1

</llo_original>
